<compile_context>
chip_gen: v6e
topology: v6e:2x2x1
jax: 0.10.0
libtpu: 0.0.40
codegen_flags: <defaults>
</compile_context>

<pallas_src>
import jax
import jax.numpy as jnp
from jax import lax
from jax.experimental import pallas as pl
from jax.experimental.pallas import tpu as pltpu


def _choose_groups_per_step(ng, group_bytes, target_bytes=256 * 1024):
    """Largest divisor TB of ng with TB*group_bytes <= target, keeping >= 2 grid steps
    when ng >= 2 (so both v7x TensorCores get work via the 'parallel' grid axis)."""
    best = 1
    for tb in range(1, ng + 1):
        if ng % tb:
            continue
        if tb * group_bytes > target_bytes:
            break
        if ng // tb >= min(ng, 2):
            best = tb
    return best


def _make_fusion_kernel(n_ends, G, C, Cout, H, W, HW_pad, TB, use_mxu):
    """Fused kernel: weighted fusion + 3x3 depthwise + 1x1 pointwise, per packed group."""
    GC = G * C

    def kernel(coef_ref, *refs):
        # refs = (x_0 .. x_{n_ends-1}, dw_w, pw_w, pw_b, out)
        x_refs = refs[:n_ends]
        dw_w_ref, pw_w_ref, pw_b_ref, out_ref = refs[n_ends:]

        # ---- hoisted per-step constants (masks, weights) --------------------------
        flat = lax.broadcasted_iota(jnp.int32, (1, HW_pad), 1)               # s
        ncols = -(-HW_pad // W)
        col = jnp.tile(lax.broadcasted_iota(jnp.int32, (1, W), 1),
                       (1, ncols))[:, :HW_pad]                               # s % W
        m_left = col >= 1                  # tap dx = -1 valid at this output column
        m_right = col <= W - 2             # tap dx = +1 valid
        m_up = flat >= W                   # tap dy = -1 valid at this output row
        m_down = flat < (H - 1) * W        # tap dy = +1 valid

        dw_all = dw_w_ref[...]             # (GC, 9) tap weights  — single hoisted load
        pw = pw_w_ref[...]                 # (G*Cout, GC) block-diagonal pointwise weight
        pw_b = pw_b_ref[...]               # (G*Cout, 1) pointwise bias (dw bias folded in)

        # Process one packed group at a time: the per-group working set is only a few
        # vregs even when TB (groups per step, i.e. DMA size) is large.
        # TODO(synk): for very large H*W additionally chunk the HW axis here (with a
        # W-element halo) so fused / dx-variants / acc stay under ~48 live vregs.
        for t in range(TB):
            # ---- weighted fusion (coefficients precomputed & prefetched) ----------
            fused = coef_ref[0] * x_refs[0][t].astype(jnp.float32)
            for i in range(1, n_ends):
                fused = fused + coef_ref[i] * x_refs[i][t].astype(jnp.float32)

            # ---- 3x3 depthwise conv (padding=1), entirely in registers ------------
            # Pre-mask the dx-shifted variants once (2 XLU rolls + 2 selects), then only
            # a row mask per dy: ~half the per-tap masking ops vs masking inside the
            # 9-tap loop.  All wrap-around from the circular rolls is zeroed by masks.
            xm = jnp.where(m_left, pltpu.roll(fused, shift=1, axis=1), 0.0)           # x-1
            xp = jnp.where(m_right, pltpu.roll(fused, shift=HW_pad - 1, axis=1), 0.0)  # x+1
            dx_vars = (xm, fused, xp)      # dx = -1, 0, +1

            acc = None
            for dy, k_dy, m_row in ((-1, W, m_up), (0, 0, None), (1, HW_pad - W, m_down)):
                for dxi, v in enumerate(dx_vars):
                    if dy == 0:
                        s = v
                    else:
                        s = jnp.where(m_row, pltpu.roll(v, shift=k_dy, axis=1), 0.0)
                    tap = (dy + 1) * 3 + dxi
                    term = s * dw_all[:, tap:tap + 1]      # (GC,HW) * (GC,1) per-chan tap
                    acc = term if acc is None else acc + term

            # ---- 1x1 pointwise conv (depthwise bias already folded into pw_b) -----
            if use_mxu:
                # Genuinely large channel count: MXU with bf16 operands, f32 accumulation.
                y = jnp.dot(pw.astype(jnp.bfloat16), acc.astype(jnp.bfloat16),
                            preferred_element_type=jnp.float32)
            else:
                # Small channel count: GC broadcast-FMAs on the VPU beat MXU push/pop
                # latency + 128/256-wide K/M padding.
                y = pw[:, 0:1] * acc[0:1, :]
                for c in range(1, GC):
                    y = y + pw[:, c:c + 1] * acc[c:c + 1, :]

            out_ref[t] = (y + pw_b).astype(out_ref.dtype)

    return kernel


def fusion_module_forward(inputs_nchw, theta, dw_w, dw_b, pw_w, pw_b):
    """FusionModule forward.

    inputs_nchw: list of n_ends arrays, each [N, C, H, W] (PyTorch layout).
    theta:       [n_ends]    fusion weights.
    dw_w:        [C, 3, 3]   depthwise weights (torch weight[:, 0]).
    dw_b:        [C]         depthwise bias.
    pw_w:        [Cout, Cin] pointwise weights (torch weight[:, :, 0, 0]).
    pw_b:        [Cout]      pointwise bias.
    Returns [N, Cout, H, W].
    """
    n_ends = len(inputs_nchw)
    N, C, H, W = inputs_nchw[0].shape
    Cout = pw_w.shape[0]
    HW = H * W
    HW_pad = -(-HW // 128) * 128            # keep output stores lane-dense (unmasked vst)

    # Sublane packing: for C in {1,2,4} pack G = 8//C images per group so G*C fills the
    # 8 f32 sublanes of every vreg (full VPU/XLU utilization in the conv section).
    G = (8 // C) if (C < 8 and 8 % C == 0) else 1
    NG = -(-N // G)
    N_pad = NG * G
    GC, GCout = G * C, G * Cout

    # Groups per grid step: grow per-step DMA toward ~0.25-1 MiB total to amortize the
    # ~0.35 us/step overhead, while keeping >= 2 grid steps when possible (v7x dual TC).
    group_bytes = GC * HW_pad * 4
    TB = _choose_groups_per_step(NG, group_bytes)
    steps = NG // TB

    def prep(x):
        x = jnp.asarray(x, jnp.float32).reshape(N, C, HW)        # free reshape
        if HW_pad != HW:                                         # only when HW % 128 != 0
            x = jnp.pad(x, ((0, 0), (0, 0), (0, HW_pad - HW)))
        if N_pad != N:                                           # only when G doesn't divide N
            x = jnp.pad(x, ((0, N_pad - N), (0, 0), (0, 0)))
        return x.reshape(NG, GC, HW_pad)                         # free leading-dim grouping
    xs = [prep(x) for x in inputs_nchw]

    # Parameters (torch layouts): tile depthwise taps per packed group, fold the depthwise
    # bias into the pointwise bias (pw_b' = pw_b + pw_w @ dw_b), and build a
    # block-diagonal pointwise weight over the G packed images.
    dw_w2 = jnp.tile(jnp.asarray(dw_w, jnp.float32).reshape(C, 9), (G, 1))     # (GC, 9)
    pw_w32 = jnp.asarray(pw_w, jnp.float32)
    pw_b_fold = jnp.asarray(pw_b, jnp.float32) + pw_w32 @ jnp.asarray(dw_b, jnp.float32)
    pw_b2 = jnp.tile(pw_b_fold.reshape(Cout, 1), (G, 1))                       # (GCout, 1)

    # Pointwise path crossover (generation-dependent: v5e 128x128 MXU -> ~16-32,
    # v6e/v7x 256x256 bf16 -> higher).  Note G > 1 only happens when GC <= 8.
    use_mxu = GC > 32
    pw_k = pw_w32 if use_mxu else jnp.kron(jnp.eye(G, dtype=jnp.float32), pw_w32)

    # Normalized fusion coefficients precomputed once, scalar-prefetched to SMEM.
    w = jax.nn.relu(jnp.asarray(theta, jnp.float32))
    coef = w / (w.sum() + jnp.float32(1e-4))                                   # (n_ends,)

    kernel = _make_fusion_kernel(n_ends, G, C, Cout, H, W, HW_pad, TB, use_mxu)

    x_spec = pl.BlockSpec((TB, GC, HW_pad), lambda b, cf: (b, 0, 0))
    grid_spec = pltpu.PrefetchScalarGridSpec(
        num_scalar_prefetch=1,              # coef -> SMEM
        grid=(steps,),                      # "parallel": feeds both v7x TCs when steps >= 2
        in_specs=[x_spec] * n_ends + [
            pl.BlockSpec((GC, 9), lambda b, cf: (0, 0)),
            pl.BlockSpec(pw_k.shape, lambda b, cf: (0, 0)),
            pl.BlockSpec((GCout, 1), lambda b, cf: (0, 0)),
        ],
        out_specs=pl.BlockSpec((TB, GCout, HW_pad), lambda b, cf: (b, 0, 0)),
    )

    out = pl.pallas_call(
        kernel,
        out_shape=jax.ShapeDtypeStruct((NG, GCout, HW_pad), jnp.float32),
        grid_spec=grid_spec,
        compiler_params=pltpu.CompilerParams(dimension_semantics=("parallel",)),
        # NOTE: per-step VMEM ~= 2*(n_ends+1)*TB*group_bytes (double-buffered I/O) plus
        # tiny weights; the TB cap keeps this ~2 MiB.  For much larger C*H*W, lower the
        # target in _choose_groups_per_step (v7x has 64 MiB VMEM, not 128) and/or set
        # vmem_limit_bytes here.
    )(coef, *xs, dw_w2, pw_k, pw_b2)

    out = out.reshape(N_pad, Cout, HW_pad)[:N, :, :HW]    # drop pad (no-op for test shapes)
    return out.reshape(N, Cout, H, W)                     # free reshape back to NCHW


def _reference(inputs_nchw, theta, dw_w, dw_b, pw_w, pw_b):
    """Pure-JAX reference mirroring the PyTorch semantics (NCHW)."""
    w = jax.nn.relu(theta)
    num = 0
    for wi, x in zip(w, inputs_nchw):
        num = num + wi * x
    den = w.sum() + 1e-4
    z = num / den
    C = z.shape[1]
    # depthwise 3x3, groups=C, padding=1
    dw_k = jnp.transpose(dw_w, (1, 2, 0))[:, :, None, :]   # (3,3,1,C) HWIO, I=in/groups=1
    zd = lax.conv_general_dilated(
        z, dw_k, window_strides=(1, 1), padding='SAME',
        dimension_numbers=('NCHW', 'HWIO', 'NCHW'), feature_group_count=C)
    zd = zd + dw_b.reshape(1, C, 1, 1)
    # pointwise 1x1 ; pw_w is (Cout, Cin) -> HWIO kernel (1,1,Cin,Cout)
    pw_k = jnp.transpose(pw_w)[None, None, :, :]
    out = lax.conv_general_dilated(
        zd, pw_k, window_strides=(1, 1), padding='SAME',
        dimension_numbers=('NCHW', 'HWIO', 'NCHW'))
    return out + pw_b.reshape(1, pw_w.shape[0], 1, 1)


if __name__ == "__main__":
    n_ends, N, C, H, W = 3, 2, 4, 16, 16

    key = jax.random.PRNGKey(0)
    keys = jax.random.split(key, 8)

    # deterministic example inputs (list of n_ends NCHW tensors)
    inputs = [jax.random.normal(keys[i], (N, C, H, W), jnp.float32)
              for i in range(n_ends)]

    # parameters (torch init: fusion weights = ones; conv weights random, torch layouts)
    theta = jnp.ones((n_ends,), jnp.float32)
    dw_w = 0.1 * jax.random.normal(keys[4], (C, 3, 3), jnp.float32)  # depthwise (C,3,3)
    dw_b = 0.1 * jax.random.normal(keys[5], (C,), jnp.float32)
    pw_w = 0.1 * jax.random.normal(keys[6], (C, C), jnp.float32)     # pointwise (Cout,Cin)
    pw_b = 0.1 * jax.random.normal(keys[7], (C,), jnp.float32)

    out = fusion_module_forward(inputs, theta, dw_w, dw_b, pw_w, pw_b)
    out = jax.block_until_ready(out)

    ref = _reference(inputs, theta, dw_w, dw_b, pw_w, pw_b)
    assert out.shape == (N, C, H, W)
    assert jnp.allclose(out, ref, rtol=1e-4, atol=1e-5), "mismatch vs reference"

    print("KERNEL_OK")
</pallas_src>

<mosaic_0001>
module attributes {stable_mosaic.version = 11 : i64} {
  func.func @kernel(%arg0: i32, %arg1: memref<3xf32, #tpu.memory_space<smem>>, %arg2: memref<1x8x256xf32, #tpu.memory_space<vmem>>, %arg3: memref<1x8x256xf32, #tpu.memory_space<vmem>>, %arg4: memref<1x8x256xf32, #tpu.memory_space<vmem>>, %arg5: memref<8x9xf32, #tpu.memory_space<vmem>>, %arg6: memref<8x8xf32, #tpu.memory_space<vmem>>, %arg7: memref<8x1xf32, #tpu.memory_space<vmem>>, %arg8: memref<1x8x256xf32, #tpu.memory_space<vmem>>) attributes {dimension_semantics = [#tpu.dimension_semantics<parallel>], iteration_bounds = array<i64: 1>, scalar_prefetch = 1 : i64, scratch_operands = 0 : i64, tpu.core_type = #tpu.core_type<tc>, window_params = [{transform_indices = @transform_0, window_bounds = array<i64: 1, 8, 256>}, {transform_indices = @transform_1, window_bounds = array<i64: 1, 8, 256>}, {transform_indices = @transform_2, window_bounds = array<i64: 1, 8, 256>}, {pipeline_mode = #tpu.pipeline_mode<synchronous>, transform_indices = @transform_3, window_bounds = array<i64: 8, 9>}, {pipeline_mode = #tpu.pipeline_mode<synchronous>, transform_indices = @transform_4, window_bounds = array<i64: 8, 8>}, {pipeline_mode = #tpu.pipeline_mode<synchronous>, transform_indices = @transform_5, window_bounds = array<i64: 8, 1>}, {transform_indices = @transform_6, window_bounds = array<i64: 1, 8, 256>}]} {
    %0 = tpu.iota {dimensions = array<i32: 1>} : vector<1x256xi32>
    %1 = tpu.iota {dimensions = array<i32: 1>} : vector<1x16xi32>
    %2 = tpu.concatenate %1, %1, %1, %1, %1, %1, %1, %1, %1, %1, %1, %1, %1, %1, %1, %1 in 1 : vector<1x16xi32>, vector<1x16xi32>, vector<1x16xi32>, vector<1x16xi32>, vector<1x16xi32>, vector<1x16xi32>, vector<1x16xi32>, vector<1x16xi32>, vector<1x16xi32>, vector<1x16xi32>, vector<1x16xi32>, vector<1x16xi32>, vector<1x16xi32>, vector<1x16xi32>, vector<1x16xi32>, vector<1x16xi32> -> vector<1x256xi32>
    %c1_i32 = arith.constant 1 : i32
    %3 = vector.broadcast %c1_i32 : i32 to vector<1x256xi32>
    %4 = arith.cmpi sge, %2, %3 : vector<1x256xi32>
    %c14_i32 = arith.constant 14 : i32
    %5 = vector.broadcast %c14_i32 : i32 to vector<1x256xi32>
    %6 = arith.cmpi sle, %2, %5 : vector<1x256xi32>
    %c16_i32 = arith.constant 16 : i32
    %7 = vector.broadcast %c16_i32 : i32 to vector<1x256xi32>
    %8 = arith.cmpi sge, %0, %7 : vector<1x256xi32>
    %c240_i32 = arith.constant 240 : i32
    %9 = vector.broadcast %c240_i32 : i32 to vector<1x256xi32>
    %10 = arith.cmpi slt, %0, %9 : vector<1x256xi32>
    %c0 = arith.constant 0 : index
    %c0_0 = arith.constant 0 : index
    %11 = vector.load %arg5[%c0, %c0_0] : memref<8x9xf32, #tpu.memory_space<vmem>>, vector<8x9xf32>
    %c0_1 = arith.constant 0 : index
    %c0_2 = arith.constant 0 : index
    %12 = vector.load %arg6[%c0_1, %c0_2] : memref<8x8xf32, #tpu.memory_space<vmem>>, vector<8x8xf32>
    %c0_3 = arith.constant 0 : index
    %c0_4 = arith.constant 0 : index
    %13 = vector.load %arg7[%c0_3, %c0_4] : memref<8x1xf32, #tpu.memory_space<vmem>>, vector<8x1xf32>
    %c0_5 = arith.constant 0 : index
    %14 = memref.load %arg1[%c0_5] : memref<3xf32, #tpu.memory_space<smem>>
    %c0_6 = arith.constant 0 : index
    %c0_7 = arith.constant 0 : index
    %c0_8 = arith.constant 0 : index
    %15 = vector.load %arg2[%c0_6, %c0_7, %c0_8] : memref<1x8x256xf32, #tpu.memory_space<vmem>>, vector<1x8x256xf32>
    %16 = vector.shape_cast %15 : vector<1x8x256xf32> to vector<8x256xf32>
    %17 = vector.broadcast %14 : f32 to vector<8x256xf32>
    %18 = arith.mulf %17, %16 : vector<8x256xf32>
    %c1 = arith.constant 1 : index
    %19 = memref.load %arg1[%c1] : memref<3xf32, #tpu.memory_space<smem>>
    %c0_9 = arith.constant 0 : index
    %c0_10 = arith.constant 0 : index
    %c0_11 = arith.constant 0 : index
    %20 = vector.load %arg3[%c0_9, %c0_10, %c0_11] : memref<1x8x256xf32, #tpu.memory_space<vmem>>, vector<1x8x256xf32>
    %21 = vector.shape_cast %20 : vector<1x8x256xf32> to vector<8x256xf32>
    %22 = vector.broadcast %19 : f32 to vector<8x256xf32>
    %23 = arith.mulf %22, %21 : vector<8x256xf32>
    %24 = arith.addf %18, %23 : vector<8x256xf32>
    %c2 = arith.constant 2 : index
    %25 = memref.load %arg1[%c2] : memref<3xf32, #tpu.memory_space<smem>>
    %c0_12 = arith.constant 0 : index
    %c0_13 = arith.constant 0 : index
    %c0_14 = arith.constant 0 : index
    %26 = vector.load %arg4[%c0_12, %c0_13, %c0_14] : memref<1x8x256xf32, #tpu.memory_space<vmem>>, vector<1x8x256xf32>
    %27 = vector.shape_cast %26 : vector<1x8x256xf32> to vector<8x256xf32>
    %28 = vector.broadcast %25 : f32 to vector<8x256xf32>
    %29 = arith.mulf %28, %27 : vector<8x256xf32>
    %30 = arith.addf %24, %29 : vector<8x256xf32>
    %c1_i32_15 = arith.constant 1 : i32
    %31 = tpu.dynamic_rotate %30 by %c1_i32_15 dim 1 : vector<8x256xf32>, i32 -> vector<8x256xf32>
    %cst = arith.constant 0.000000e+00 : f32
    %32 = vector.shape_cast %4 : vector<1x256xi1> to vector<1x256xi1>
    %33 = vector.broadcast %32 : vector<1x256xi1> to vector<8x256xi1>
    %34 = vector.broadcast %cst : f32 to vector<8x256xf32>
    %35 = arith.select %33, %31, %34 : vector<8x256xi1>, vector<8x256xf32>
    %c255_i32 = arith.constant 255 : i32
    %36 = tpu.dynamic_rotate %30 by %c255_i32 dim 1 : vector<8x256xf32>, i32 -> vector<8x256xf32>
    %cst_16 = arith.constant 0.000000e+00 : f32
    %37 = vector.shape_cast %6 : vector<1x256xi1> to vector<1x256xi1>
    %38 = vector.broadcast %37 : vector<1x256xi1> to vector<8x256xi1>
    %39 = vector.broadcast %cst_16 : f32 to vector<8x256xf32>
    %40 = arith.select %38, %36, %39 : vector<8x256xi1>, vector<8x256xf32>
    %c16_i32_17 = arith.constant 16 : i32
    %41 = tpu.dynamic_rotate %35 by %c16_i32_17 dim 1 : vector<8x256xf32>, i32 -> vector<8x256xf32>
    %cst_18 = arith.constant 0.000000e+00 : f32
    %42 = vector.shape_cast %8 : vector<1x256xi1> to vector<1x256xi1>
    %43 = vector.broadcast %42 : vector<1x256xi1> to vector<8x256xi1>
    %44 = vector.broadcast %cst_18 : f32 to vector<8x256xf32>
    %45 = arith.select %43, %41, %44 : vector<8x256xi1>, vector<8x256xf32>
    %46 = vector.extract_strided_slice %11 {offsets = [0, 0], sizes = [8, 1], strides = [1, 1]} : vector<8x9xf32> to vector<8x1xf32>
    %47 = vector.broadcast %46 : vector<8x1xf32> to vector<8x256xf32>
    %48 = arith.mulf %45, %47 : vector<8x256xf32>
    %c16_i32_19 = arith.constant 16 : i32
    %49 = tpu.dynamic_rotate %30 by %c16_i32_19 dim 1 : vector<8x256xf32>, i32 -> vector<8x256xf32>
    %cst_20 = arith.constant 0.000000e+00 : f32
    %50 = vector.shape_cast %8 : vector<1x256xi1> to vector<1x256xi1>
    %51 = vector.broadcast %50 : vector<1x256xi1> to vector<8x256xi1>
    %52 = vector.broadcast %cst_20 : f32 to vector<8x256xf32>
    %53 = arith.select %51, %49, %52 : vector<8x256xi1>, vector<8x256xf32>
    %54 = vector.extract_strided_slice %11 {offsets = [0, 1], sizes = [8, 1], strides = [1, 1]} : vector<8x9xf32> to vector<8x1xf32>
    %55 = vector.broadcast %54 : vector<8x1xf32> to vector<8x256xf32>
    %56 = arith.mulf %53, %55 : vector<8x256xf32>
    %57 = arith.addf %48, %56 : vector<8x256xf32>
    %c16_i32_21 = arith.constant 16 : i32
    %58 = tpu.dynamic_rotate %40 by %c16_i32_21 dim 1 : vector<8x256xf32>, i32 -> vector<8x256xf32>
    %cst_22 = arith.constant 0.000000e+00 : f32
    %59 = vector.shape_cast %8 : vector<1x256xi1> to vector<1x256xi1>
    %60 = vector.broadcast %59 : vector<1x256xi1> to vector<8x256xi1>
    %61 = vector.broadcast %cst_22 : f32 to vector<8x256xf32>
    %62 = arith.select %60, %58, %61 : vector<8x256xi1>, vector<8x256xf32>
    %63 = vector.extract_strided_slice %11 {offsets = [0, 2], sizes = [8, 1], strides = [1, 1]} : vector<8x9xf32> to vector<8x1xf32>
    %64 = vector.broadcast %63 : vector<8x1xf32> to vector<8x256xf32>
    %65 = arith.mulf %62, %64 : vector<8x256xf32>
    %66 = arith.addf %57, %65 : vector<8x256xf32>
    %67 = vector.extract_strided_slice %11 {offsets = [0, 3], sizes = [8, 1], strides = [1, 1]} : vector<8x9xf32> to vector<8x1xf32>
    %68 = vector.broadcast %67 : vector<8x1xf32> to vector<8x256xf32>
    %69 = arith.mulf %35, %68 : vector<8x256xf32>
    %70 = arith.addf %66, %69 : vector<8x256xf32>
    %71 = vector.extract_strided_slice %11 {offsets = [0, 4], sizes = [8, 1], strides = [1, 1]} : vector<8x9xf32> to vector<8x1xf32>
    %72 = vector.broadcast %71 : vector<8x1xf32> to vector<8x256xf32>
    %73 = arith.mulf %30, %72 : vector<8x256xf32>
    %74 = arith.addf %70, %73 : vector<8x256xf32>
    %75 = vector.extract_strided_slice %11 {offsets = [0, 5], sizes = [8, 1], strides = [1, 1]} : vector<8x9xf32> to vector<8x1xf32>
    %76 = vector.broadcast %75 : vector<8x1xf32> to vector<8x256xf32>
    %77 = arith.mulf %40, %76 : vector<8x256xf32>
    %78 = arith.addf %74, %77 : vector<8x256xf32>
    %c240_i32_23 = arith.constant 240 : i32
    %79 = tpu.dynamic_rotate %35 by %c240_i32_23 dim 1 : vector<8x256xf32>, i32 -> vector<8x256xf32>
    %cst_24 = arith.constant 0.000000e+00 : f32
    %80 = vector.shape_cast %10 : vector<1x256xi1> to vector<1x256xi1>
    %81 = vector.broadcast %80 : vector<1x256xi1> to vector<8x256xi1>
    %82 = vector.broadcast %cst_24 : f32 to vector<8x256xf32>
    %83 = arith.select %81, %79, %82 : vector<8x256xi1>, vector<8x256xf32>
    %84 = vector.extract_strided_slice %11 {offsets = [0, 6], sizes = [8, 1], strides = [1, 1]} : vector<8x9xf32> to vector<8x1xf32>
    %85 = vector.broadcast %84 : vector<8x1xf32> to vector<8x256xf32>
    %86 = arith.mulf %83, %85 : vector<8x256xf32>
    %87 = arith.addf %78, %86 : vector<8x256xf32>
    %c240_i32_25 = arith.constant 240 : i32
    %88 = tpu.dynamic_rotate %30 by %c240_i32_25 dim 1 : vector<8x256xf32>, i32 -> vector<8x256xf32>
    %cst_26 = arith.constant 0.000000e+00 : f32
    %89 = vector.shape_cast %10 : vector<1x256xi1> to vector<1x256xi1>
    %90 = vector.broadcast %89 : vector<1x256xi1> to vector<8x256xi1>
    %91 = vector.broadcast %cst_26 : f32 to vector<8x256xf32>
    %92 = arith.select %90, %88, %91 : vector<8x256xi1>, vector<8x256xf32>
    %93 = vector.extract_strided_slice %11 {offsets = [0, 7], sizes = [8, 1], strides = [1, 1]} : vector<8x9xf32> to vector<8x1xf32>
    %94 = vector.broadcast %93 : vector<8x1xf32> to vector<8x256xf32>
    %95 = arith.mulf %92, %94 : vector<8x256xf32>
    %96 = arith.addf %87, %95 : vector<8x256xf32>
    %c240_i32_27 = arith.constant 240 : i32
    %97 = tpu.dynamic_rotate %40 by %c240_i32_27 dim 1 : vector<8x256xf32>, i32 -> vector<8x256xf32>
    %cst_28 = arith.constant 0.000000e+00 : f32
    %98 = vector.shape_cast %10 : vector<1x256xi1> to vector<1x256xi1>
    %99 = vector.broadcast %98 : vector<1x256xi1> to vector<8x256xi1>
    %100 = vector.broadcast %cst_28 : f32 to vector<8x256xf32>
    %101 = arith.select %99, %97, %100 : vector<8x256xi1>, vector<8x256xf32>
    %102 = vector.extract_strided_slice %11 {offsets = [0, 8], sizes = [8, 1], strides = [1, 1]} : vector<8x9xf32> to vector<8x1xf32>
    %103 = vector.broadcast %102 : vector<8x1xf32> to vector<8x256xf32>
    %104 = arith.mulf %101, %103 : vector<8x256xf32>
    %105 = arith.addf %96, %104 : vector<8x256xf32>
    %106 = vector.extract_strided_slice %12 {offsets = [0, 0], sizes = [8, 1], strides = [1, 1]} : vector<8x8xf32> to vector<8x1xf32>
    %107 = vector.extract_strided_slice %105 {offsets = [0, 0], sizes = [1, 256], strides = [1, 1]} : vector<8x256xf32> to vector<1x256xf32>
    %108 = vector.broadcast %106 : vector<8x1xf32> to vector<8x256xf32>
    %109 = vector.broadcast %107 : vector<1x256xf32> to vector<8x256xf32>
    %110 = arith.mulf %108, %109 : vector<8x256xf32>
    %111 = vector.extract_strided_slice %12 {offsets = [0, 1], sizes = [8, 1], strides = [1, 1]} : vector<8x8xf32> to vector<8x1xf32>
    %112 = vector.extract_strided_slice %105 {offsets = [1, 0], sizes = [1, 256], strides = [1, 1]} : vector<8x256xf32> to vector<1x256xf32>
    %113 = vector.broadcast %111 : vector<8x1xf32> to vector<8x256xf32>
    %114 = vector.broadcast %112 : vector<1x256xf32> to vector<8x256xf32>
    %115 = arith.mulf %113, %114 : vector<8x256xf32>
    %116 = arith.addf %110, %115 : vector<8x256xf32>
    %117 = vector.extract_strided_slice %12 {offsets = [0, 2], sizes = [8, 1], strides = [1, 1]} : vector<8x8xf32> to vector<8x1xf32>
    %118 = vector.extract_strided_slice %105 {offsets = [2, 0], sizes = [1, 256], strides = [1, 1]} : vector<8x256xf32> to vector<1x256xf32>
    %119 = vector.broadcast %117 : vector<8x1xf32> to vector<8x256xf32>
    %120 = vector.broadcast %118 : vector<1x256xf32> to vector<8x256xf32>
    %121 = arith.mulf %119, %120 : vector<8x256xf32>
    %122 = arith.addf %116, %121 : vector<8x256xf32>
    %123 = vector.extract_strided_slice %12 {offsets = [0, 3], sizes = [8, 1], strides = [1, 1]} : vector<8x8xf32> to vector<8x1xf32>
    %124 = vector.extract_strided_slice %105 {offsets = [3, 0], sizes = [1, 256], strides = [1, 1]} : vector<8x256xf32> to vector<1x256xf32>
    %125 = vector.broadcast %123 : vector<8x1xf32> to vector<8x256xf32>
    %126 = vector.broadcast %124 : vector<1x256xf32> to vector<8x256xf32>
    %127 = arith.mulf %125, %126 : vector<8x256xf32>
    %128 = arith.addf %122, %127 : vector<8x256xf32>
    %129 = vector.extract_strided_slice %12 {offsets = [0, 4], sizes = [8, 1], strides = [1, 1]} : vector<8x8xf32> to vector<8x1xf32>
    %130 = vector.extract_strided_slice %105 {offsets = [4, 0], sizes = [1, 256], strides = [1, 1]} : vector<8x256xf32> to vector<1x256xf32>
    %131 = vector.broadcast %129 : vector<8x1xf32> to vector<8x256xf32>
    %132 = vector.broadcast %130 : vector<1x256xf32> to vector<8x256xf32>
    %133 = arith.mulf %131, %132 : vector<8x256xf32>
    %134 = arith.addf %128, %133 : vector<8x256xf32>
    %135 = vector.extract_strided_slice %12 {offsets = [0, 5], sizes = [8, 1], strides = [1, 1]} : vector<8x8xf32> to vector<8x1xf32>
    %136 = vector.extract_strided_slice %105 {offsets = [5, 0], sizes = [1, 256], strides = [1, 1]} : vector<8x256xf32> to vector<1x256xf32>
    %137 = vector.broadcast %135 : vector<8x1xf32> to vector<8x256xf32>
    %138 = vector.broadcast %136 : vector<1x256xf32> to vector<8x256xf32>
    %139 = arith.mulf %137, %138 : vector<8x256xf32>
    %140 = arith.addf %134, %139 : vector<8x256xf32>
    %141 = vector.extract_strided_slice %12 {offsets = [0, 6], sizes = [8, 1], strides = [1, 1]} : vector<8x8xf32> to vector<8x1xf32>
    %142 = vector.extract_strided_slice %105 {offsets = [6, 0], sizes = [1, 256], strides = [1, 1]} : vector<8x256xf32> to vector<1x256xf32>
    %143 = vector.broadcast %141 : vector<8x1xf32> to vector<8x256xf32>
    %144 = vector.broadcast %142 : vector<1x256xf32> to vector<8x256xf32>
    %145 = arith.mulf %143, %144 : vector<8x256xf32>
    %146 = arith.addf %140, %145 : vector<8x256xf32>
    %147 = vector.extract_strided_slice %12 {offsets = [0, 7], sizes = [8, 1], strides = [1, 1]} : vector<8x8xf32> to vector<8x1xf32>
    %148 = vector.extract_strided_slice %105 {offsets = [7, 0], sizes = [1, 256], strides = [1, 1]} : vector<8x256xf32> to vector<1x256xf32>
    %149 = vector.broadcast %147 : vector<8x1xf32> to vector<8x256xf32>
    %150 = vector.broadcast %148 : vector<1x256xf32> to vector<8x256xf32>
    %151 = arith.mulf %149, %150 : vector<8x256xf32>
    %152 = arith.addf %146, %151 : vector<8x256xf32>
    %153 = vector.broadcast %13 : vector<8x1xf32> to vector<8x256xf32>
    %154 = arith.addf %152, %153 : vector<8x256xf32>
    %c0_29 = arith.constant 0 : index
    %c0_30 = arith.constant 0 : index
    %c0_31 = arith.constant 0 : index
    %155 = vector.load %arg8[%c0_29, %c0_30, %c0_31] : memref<1x8x256xf32, #tpu.memory_space<vmem>>, vector<1x8x256xf32>
    %156 = vector.shape_cast %155 : vector<1x8x256xf32> to vector<8x256xf32>
    %157 = vector.shape_cast %154 : vector<8x256xf32> to vector<1x8x256xf32>
    tpu.vector_store %arg8[%c0_29, %c0_30, %c0_31], %157 {strides = array<i32>} : memref<1x8x256xf32, #tpu.memory_space<vmem>>, vector<1x8x256xf32>,
    return
  }
  func.func @transform_0(%arg0: i32, %arg1: memref<3xf32, #tpu.memory_space<smem>>) -> (i32, i32, i32) {
    %c0_i32 = arith.constant 0 : i32
    %c0_i32_0 = arith.constant 0 : i32
    %c0_i32_1 = arith.constant 0 : i32
    return %arg0, %c0_i32, %c0_i32_0 : i32, i32, i32
  }
  func.func @transform_1(%arg0: i32, %arg1: memref<3xf32, #tpu.memory_space<smem>>) -> (i32, i32, i32) {
    %c0_i32 = arith.constant 0 : i32
    %c0_i32_0 = arith.constant 0 : i32
    %c0_i32_1 = arith.constant 0 : i32
    return %arg0, %c0_i32, %c0_i32_0 : i32, i32, i32
  }
  func.func @transform_2(%arg0: i32, %arg1: memref<3xf32, #tpu.memory_space<smem>>) -> (i32, i32, i32) {
    %c0_i32 = arith.constant 0 : i32
    %c0_i32_0 = arith.constant 0 : i32
    %c0_i32_1 = arith.constant 0 : i32
    return %arg0, %c0_i32, %c0_i32_0 : i32, i32, i32
  }
  func.func @transform_3(%arg0: i32, %arg1: memref<3xf32, #tpu.memory_space<smem>>) -> (i32, i32) {
    %c0_i32 = arith.constant 0 : i32
    %c0_i32_0 = arith.constant 0 : i32
    %c0_i32_1 = arith.constant 0 : i32
    return %c0_i32, %c0_i32_0 : i32, i32
  }
  func.func @transform_4(%arg0: i32, %arg1: memref<3xf32, #tpu.memory_space<smem>>) -> (i32, i32) {
    %c0_i32 = arith.constant 0 : i32
    %c0_i32_0 = arith.constant 0 : i32
    %c0_i32_1 = arith.constant 0 : i32
    return %c0_i32, %c0_i32_0 : i32, i32
  }
  func.func @transform_5(%arg0: i32, %arg1: memref<3xf32, #tpu.memory_space<smem>>) -> (i32, i32) {
    %c0_i32 = arith.constant 0 : i32
    %c0_i32_0 = arith.constant 0 : i32
    %c0_i32_1 = arith.constant 0 : i32
    return %c0_i32, %c0_i32_0 : i32, i32
  }
  func.func @transform_6(%arg0: i32, %arg1: memref<3xf32, #tpu.memory_space<smem>>) -> (i32, i32, i32) {
    %c0_i32 = arith.constant 0 : i32
    %c0_i32_0 = arith.constant 0 : i32
    %c0_i32_1 = arith.constant 0 : i32
    return %arg0, %c0_i32, %c0_i32_0 : i32, i32, i32
  }
}

</mosaic_0001>

<llo_original>
// kernel: tpu_custom_call.1
$region0: #{tpu_custom_call.1}
  #allocation0 [shape = 'u32[]', space=smem, size = 0x4, offset = 0x4, fixed_abs, tag = 'smem constant byte address 0x4 - core index']
  #allocation1 [shape = 'u32[144,128]{1,0:T(1,128)}', space=vmem, size = 0x12000, scoped, tag = 'internal scratch']
  #allocation2 [shape = 's32[1]{0}', space=sflag, size = 0x4, scoped, tag = 'scoped memory for tpu_custom_call.1']
  #allocation3 [shape = 'u8[512]{0}', space=smem, size = 0x200, scoped, tag = 'prefetched SMEM operand 0']
  %s0 = inlined_call_operand.hbm [shape: f32[3], index: 0, kind: input, shape index: {}]
  %s1 = inlined_call_operand.hbm [shape: f32[1,8,256], index: 1, kind: input, shape index: {}]
  %s2 = inlined_call_operand.hbm [shape: f32[1,8,256], index: 2, kind: input, shape index: {}]
  %s3 = inlined_call_operand.hbm [shape: f32[1,8,256], index: 3, kind: input, shape index: {}]
  %s4 = inlined_call_operand.vmem [shape: f32[8,9], index: 4, kind: input, shape index: {}]
  %s5 = inlined_call_operand.vmem [shape: f32[8,8], index: 5, kind: input, shape index: {}]
  %s6 = inlined_call_operand.vmem [shape: f32[8,1], index: 6, kind: input, shape index: {}]
  %s7 = inlined_call_operand.hbm [shape: f32[1,8,256], index: 7, kind: output, shape index: {}]
  %s8 = sld [smem:[#allocation0]]
  $region46: #{tpu_custom_call.1} parent=0
    _
  %s10 = ssub.s32 1, %s8
  %s11 = scalar_select 0, %s10, %s8
  %13 = dma.hbm_to_smem %s0, 16, [#allocation3], [#allocation2]
  %14 = dma.done [#allocation2], 16
  %15 = sfence
  $region1: #{tpu_custom_call.1} parent=0
    #allocation4 [shape = 'u8[8192]{0}', space=vmem, size = 0x2000, scoped, tag = 'input window, operand 1, single buffered']
    #allocation5 [shape = 's32[1]{0}', space=sflag, size = 0x4, scoped, tag = 'scoped memory for tpu_custom_call.1']
    #allocation6 [shape = 's32[1]{0}', space=sflag, size = 0x4, scoped, tag = 'scoped memory for tpu_custom_call.1']
    #allocation7 [shape = 'u8[8192]{0}', space=vmem, size = 0x2000, scoped, tag = 'input window, operand 2, single buffered']
    #allocation8 [shape = 's32[1]{0}', space=sflag, size = 0x4, scoped, tag = 'scoped memory for tpu_custom_call.1']
    #allocation9 [shape = 'u8[8192]{0}', space=vmem, size = 0x2000, scoped, tag = 'input window, operand 3, single buffered']
    #allocation10 [shape = 'u8[8192]{0}', space=vmem, size = 0x2000, scoped, tag = 'output window, operand 0, single buffered']
    %16 = vsyncpa [#allocation5], 0
    %17 = vsyncpa [#allocation8], 0
    %18 = vsyncpa [#allocation6], 0
    // Predicated region
    $region2: #{tpu_custom_call.1} parent=1 // pred_check
      _
    $region3: #{tpu_custom_call.1} parent=1 // pred_check_branch
      %20 = sbr.rel (0) target = $region5
    $region4: #{tpu_custom_call.1} parent=1 // pred_region
      %s22 = ssub.s32 256, 256
      %23 = vsyncadd [#allocation5], %s22
      %s25 = sshll.u32 [#allocation4], 4
      %s26 = int_to_ptr.vmem [resolvable:$true] %s25
      %28 = dma.hbm_to_vmem [thread:$0]  %s1, 256, %s26, [#allocation5]
    $region5: #{tpu_custom_call.1} parent=1 // pred_fallthru
      _
    // Predicated region
    $region6: #{tpu_custom_call.1} parent=1 // pred_check
      _
    $region7: #{tpu_custom_call.1} parent=1 // pred_check_branch
      %30 = sbr.rel (0) target = $region9
    $region8: #{tpu_custom_call.1} parent=1 // pred_region
      %s32 = ssub.s32 256, 256
      %33 = vsyncadd [#allocation8], %s32
      %s35 = sshll.u32 [#allocation7], 4
      %s36 = int_to_ptr.vmem [resolvable:$true] %s35
      %38 = dma.hbm_to_vmem [thread:$0]  %s2, 256, %s36, [#allocation8]
    $region9: #{tpu_custom_call.1} parent=1 // pred_fallthru
      _
    // Predicated region
    $region10: #{tpu_custom_call.1} parent=1 // pred_check
      _
    $region11: #{tpu_custom_call.1} parent=1 // pred_check_branch
      %40 = sbr.rel (0) target = $region13
    $region12: #{tpu_custom_call.1} parent=1 // pred_region
      %s42 = ssub.s32 256, 256
      %43 = vsyncadd [#allocation8], %s42
      %s45 = sshll.u32 [#allocation9], 4
      %s46 = int_to_ptr.vmem [resolvable:$true] %s45
      %48 = dma.hbm_to_vmem [thread:$0]  %s3, 256, %s46, [#allocation8]
    $region13: #{tpu_custom_call.1} parent=1 // pred_fallthru
      _
    // Predicated region
    $region14: #{tpu_custom_call.1} parent=1 // pred_check
      _
    $region15: #{tpu_custom_call.1} parent=1 // pred_check_branch
      %50 = sbr.rel (0) target = $region17
    $region16: #{tpu_custom_call.1} parent=1 // pred_region
      _
    $region17: #{tpu_custom_call.1} parent=1 // pred_fallthru
      _
    // Predicated region
    $region18: #{tpu_custom_call.1} parent=1 // pred_check
      _
    $region19: #{tpu_custom_call.1} parent=1 // pred_check_branch
      %52 = sbr.rel (0) target = $region21
    $region20: #{tpu_custom_call.1} parent=1 // pred_region
      _
    $region21: #{tpu_custom_call.1} parent=1 // pred_fallthru
      _
    // Predicated region
    $region22: #{tpu_custom_call.1} parent=1 // pred_check
      _
    $region23: #{tpu_custom_call.1} parent=1 // pred_check_branch
      %54 = sbr.rel (0) target = $region25
    $region24: #{tpu_custom_call.1} parent=1 // pred_region
      _
    $region25: #{tpu_custom_call.1} parent=1 // pred_fallthru
      _
    // Predicated region
    $region26: #{tpu_custom_call.1} parent=1 // pred_check
      _
    $region27: #{tpu_custom_call.1} parent=1 // pred_check_branch
      %56 = sbr.rel (0) target = $region29
    $region28: #{tpu_custom_call.1} parent=1 // pred_region
      %57 = dma.done [#allocation5], 256
    $region29: #{tpu_custom_call.1} parent=1 // pred_fallthru
      _
    // Predicated region
    $region30: #{tpu_custom_call.1} parent=1 // pred_check
      _
    $region31: #{tpu_custom_call.1} parent=1 // pred_check_branch
      %59 = sbr.rel (0) target = $region33
    $region32: #{tpu_custom_call.1} parent=1 // pred_region
      %60 = dma.done [#allocation8], 256
    $region33: #{tpu_custom_call.1} parent=1 // pred_fallthru
      _
    // Predicated region
    $region34: #{tpu_custom_call.1} parent=1 // pred_check
      _
    $region35: #{tpu_custom_call.1} parent=1 // pred_check_branch
      %62 = sbr.rel (0) target = $region37
    $region36: #{tpu_custom_call.1} parent=1 // pred_region
      %63 = dma.done [#allocation8], 256
    $region37: #{tpu_custom_call.1} parent=1 // pred_fallthru
      _
    %v64 = vlaneseq
    %v65 = vand.u32 %v64, 127
    %v66 = vadd.s32 %v65, 128
    %67 = vrot.lane.b32.xlu0 %v65, 16
    %v68 = vpop.permute.xlu0 %67
    %69 = vrot.lane.b32.xlu0 %v65, 32
    %v70 = vpop.permute.xlu0 %69
    %71 = vrot.lane.b32.xlu0 %v65, 48
    %v72 = vpop.permute.xlu0 %71
    %73 = vrot.lane.b32.xlu0 %v65, 64
    %v74 = vpop.permute.xlu0 %73
    %75 = vrot.lane.b32.xlu0 %v65, 80
    %v76 = vpop.permute.xlu0 %75
    %77 = vrot.lane.b32.xlu0 %v65, 96
    %v78 = vpop.permute.xlu0 %77
    %79 = vrot.lane.b32.xlu0 %v65, 112
    %v80 = vpop.permute.xlu0 %79
    %vm81 = vcmask 130048
    %v82 = vsel %vm81, %v65, %v68
    %vm83 = vcmask 261120
    %v84 = vsel %vm83, %v82, %v70
    %vm85 = vcmask 392192
    %v86 = vsel %vm85, %v84, %v72
    %vm87 = vcmask 523264
    %v88 = vsel %vm87, %v86, %v74
    %vm89 = vcmask 654336
    %v90 = vsel %vm89, %v88, %v76
    %vm91 = vcmask 785408
    %v92 = vsel %vm91, %v90, %v78
    %vm93 = vcmask 916480
    %v94 = vsel %vm93, %v92, %v80
    %vm95 = vcmp.ge.s32.totalorder %v94, 1
    %vm96 = vcmp.le.s32.totalorder %v94, 14
    %vm97 = vcmp.ge.s32.totalorder %v65, 16
    %vm98 = vcmp.ge.s32.totalorder %v66, 16
    %vm99 = vcmp.lt.s32.totalorder %v65, 240
    %vm100 = vcmp.lt.s32.totalorder %v66, 240
    %v101 = vld [vmem:[%s4] sm:$0xff]
    %v102 = vld [vmem:[%s5] sm:$0xff]
    %v103 = vld [vmem:[%s6] sm:$0xff]
    %s104 = sld [smem:[#allocation3]]
    %v105 = vld [vmem:[#allocation4] sm:$0xff]
    %v106 = vld [vmem:[#allocation4 + $0x8] sm:$0xff]
    %v107 = vstv %s104
    %v108 = vmul.f32 %v107, %v105
    %v109 = vmul.f32 %v107, %v106
    %s110 = sld [smem:[#allocation3 + $0x1]]
    %v111 = vld [vmem:[#allocation7] sm:$0xff]
    %v112 = vld [vmem:[#allocation7 + $0x8] sm:$0xff]
    %v113 = vstv %s110
    %v114 = vmul.f32 %v113, %v111
    %v115 = vmul.f32 %v113, %v112
    %v116 = vadd.f32 %v108, %v114
    %v117 = vadd.f32 %v109, %v115
    %s118 = sld [smem:[#allocation3 + $0x2]]
    %v119 = vld [vmem:[#allocation9] sm:$0xff]
    %v120 = vld [vmem:[#allocation9 + $0x8] sm:$0xff]
    %v121 = vstv %s118
    %v122 = vmul.f32 %v121, %v119
    %v123 = vmul.f32 %v121, %v120
    %v124 = vadd.f32 %v116, %v122
    %v125 = vadd.f32 %v117, %v123
    %126 = vrot.lane.b32.xlu0 %v124, 1
    %v127 = vpop.permute.xlu0 %126
    %128 = vrot.lane.b32.xlu0 %v125, 1
    %v129 = vpop.permute.xlu0 %128
    %vm130 = vcmp.lt.s32.totalorder %v65, 1
    %v131 = vsel %vm130, %v127, %v129
    %v132 = vsel %vm130, %v129, %v127
    %v133 = vsel %vm95, 1, 0
    %v134 = vlaneseq
    %v135 = vshrl.u32 %v134, 7
    %v136 = vsub.s32 0, %v135
    %v137 = vrot.slane %v133, %v136
    %vm138 = vcmp.eq.s32.totalorder %v137, 1
    %v139 = vsel %vm138, %v132, 0.0
    %v140 = vsel %vm138, %v131, 0.0
    %141 = vrot.lane.b32.xlu0 %v124, 127
    %v142 = vpop.permute.xlu0 %141
    %143 = vrot.lane.b32.xlu0 %v125, 127
    %v144 = vpop.permute.xlu0 %143
    %vm145 = vcmp.lt.s32.totalorder %v65, 127
    %v146 = vsel %vm145, %v142, %v144
    %v147 = vsel %vm145, %v144, %v142
    %v148 = vsel %vm96, 1, 0
    %v149 = vlaneseq
    %v150 = vshrl.u32 %v149, 7
    %v151 = vsub.s32 0, %v150
    %v152 = vrot.slane %v148, %v151
    %vm153 = vcmp.eq.s32.totalorder %v152, 1
    %v154 = vsel %vm153, %v146, 0.0
    %v155 = vsel %vm153, %v147, 0.0
    %156 = vrot.lane.b32.xlu0 %v139, 16
    %v157 = vpop.permute.xlu0 %156
    %158 = vrot.lane.b32.xlu0 %v140, 16
    %v159 = vpop.permute.xlu0 %158
    %vm160 = vcmp.lt.s32.totalorder %v65, 16
    %v161 = vsel %vm160, %v157, %v159
    %v162 = vsel %vm160, %v159, %v157
    %v163 = vsel %vm97, 1, 0
    %v164 = vsel %vm98, 1, 0
    %vm165 = vcmp.eq.s32.totalorder %v163, 1
    %vm166 = vcmp.eq.s32.totalorder %v164, 1
    %v167 = vsel %vm165, %v162, 0.0
    %v168 = vsel %vm166, %v161, 0.0
    %170 = vset.pattern.permute.xlu0 0
    %171 = vperm.xlu0 %170, %v101
    %v172 = vpop.permute.xlu0 %171
    %v174 = vmul.f32 %v167, %v172
    %v175 = vmul.f32 %v168, %v172
    %176 = vrot.lane.b32.xlu0 %v124, 16
    %v177 = vpop.permute.xlu0 %176
    %178 = vrot.lane.b32.xlu0 %v125, 16
    %v179 = vpop.permute.xlu0 %178
    %v180 = vsel %vm160, %v177, %v179
    %v181 = vsel %vm160, %v179, %v177
    %v182 = vsel %vm165, %v181, 0.0
    %v183 = vsel %vm166, %v180, 0.0
    %184 = vset.pattern.permute.xlu0 1
    %185 = vperm.xlu0 %184, %v101
    %v186 = vpop.permute.xlu0 %185
    %v188 = vmul.f32 %v182, %v186
    %v189 = vmul.f32 %v183, %v186
    %v190 = vadd.f32 %v174, %v188
    %v191 = vadd.f32 %v175, %v189
    %192 = vrot.lane.b32.xlu0 %v154, 16
    %v193 = vpop.permute.xlu0 %192
    %194 = vrot.lane.b32.xlu0 %v155, 16
    %v195 = vpop.permute.xlu0 %194
    %v196 = vsel %vm160, %v193, %v195
    %v197 = vsel %vm160, %v195, %v193
    %v198 = vsel %vm165, %v197, 0.0
    %v199 = vsel %vm166, %v196, 0.0
    %200 = vset.pattern.permute.xlu0 2
    %201 = vperm.xlu0 %200, %v101
    %v202 = vpop.permute.xlu0 %201
    %v204 = vmul.f32 %v198, %v202
    %v205 = vmul.f32 %v199, %v202
    %v206 = vadd.f32 %v190, %v204
    %v207 = vadd.f32 %v191, %v205
    %208 = vset.pattern.permute.xlu0 3
    %209 = vperm.xlu0 %208, %v101
    %v210 = vpop.permute.xlu0 %209
    %v212 = vmul.f32 %v139, %v210
    %v213 = vmul.f32 %v140, %v210
    %v214 = vadd.f32 %v206, %v212
    %v215 = vadd.f32 %v207, %v213
    %216 = vset.pattern.permute.xlu0 4
    %217 = vperm.xlu0 %216, %v101
    %v218 = vpop.permute.xlu0 %217
    %v220 = vmul.f32 %v124, %v218
    %v221 = vmul.f32 %v125, %v218
    %v222 = vadd.f32 %v214, %v220
    %v223 = vadd.f32 %v215, %v221
    %224 = vset.pattern.permute.xlu0 5
    %225 = vperm.xlu0 %224, %v101
    %v226 = vpop.permute.xlu0 %225
    %v228 = vmul.f32 %v154, %v226
    %v229 = vmul.f32 %v155, %v226
    %v230 = vadd.f32 %v222, %v228
    %v231 = vadd.f32 %v223, %v229
    %232 = vrot.lane.b32.xlu0 %v139, 112
    %v233 = vpop.permute.xlu0 %232
    %234 = vrot.lane.b32.xlu0 %v140, 112
    %v235 = vpop.permute.xlu0 %234
    %vm236 = vcmp.lt.s32.totalorder %v65, 112
    %v237 = vsel %vm236, %v233, %v235
    %v238 = vsel %vm236, %v235, %v233
    %v239 = vsel %vm99, 1, 0
    %v240 = vsel %vm100, 1, 0
    %vm241 = vcmp.eq.s32.totalorder %v239, 1
    %vm242 = vcmp.eq.s32.totalorder %v240, 1
    %v243 = vsel %vm241, %v237, 0.0
    %v244 = vsel %vm242, %v238, 0.0
    %245 = vset.pattern.permute.xlu0 6
    %246 = vperm.xlu0 %245, %v101
    %v247 = vpop.permute.xlu0 %246
    %v249 = vmul.f32 %v243, %v247
    %v250 = vmul.f32 %v244, %v247
    %v251 = vadd.f32 %v230, %v249
    %v252 = vadd.f32 %v231, %v250
    %253 = vrot.lane.b32.xlu0 %v124, 112
    %v254 = vpop.permute.xlu0 %253
    %255 = vrot.lane.b32.xlu0 %v125, 112
    %v256 = vpop.permute.xlu0 %255
    %v257 = vsel %vm236, %v254, %v256
    %v258 = vsel %vm236, %v256, %v254
    %v259 = vsel %vm241, %v257, 0.0
    %v260 = vsel %vm242, %v258, 0.0
    %261 = vset.pattern.permute.xlu0 7
    %262 = vperm.xlu0 %261, %v101
    %v263 = vpop.permute.xlu0 %262
    %v265 = vmul.f32 %v259, %v263
    %v266 = vmul.f32 %v260, %v263
    %v267 = vadd.f32 %v251, %v265
    %v268 = vadd.f32 %v252, %v266
    %269 = vrot.lane.b32.xlu0 %v154, 112
    %v270 = vpop.permute.xlu0 %269
    %271 = vrot.lane.b32.xlu0 %v155, 112
    %v272 = vpop.permute.xlu0 %271
    %v273 = vsel %vm236, %v270, %v272
    %v274 = vsel %vm236, %v272, %v270
    %v275 = vsel %vm241, %v273, 0.0
    %v276 = vsel %vm242, %v274, 0.0
    %277 = vset.pattern.permute.xlu0 8
    %278 = vperm.xlu0 %277, %v101
    %v279 = vpop.permute.xlu0 %278
    %v281 = vmul.f32 %v275, %v279
    %v282 = vmul.f32 %v276, %v279
    %v283 = vadd.f32 %v267, %v281
    %v284 = vadd.f32 %v268, %v282
    %286 = vset.pattern.permute.xlu0 0
    %287 = vperm.xlu0 %286, %v102
    %v288 = vpop.permute.xlu0 %287
    %v290 = vlaneseq
    %v291 = vshrl.u32 %v290, 7
    %v292 = vsub.s32 0, %v291
    %v293 = vrot.slane %v283, %v292
    %v294 = vlaneseq
    %v295 = vshrl.u32 %v294, 7
    %v296 = vsub.s32 0, %v295
    %v297 = vrot.slane %v284, %v296
    %v298 = vmul.f32 %v288, %v293
    %v299 = vmul.f32 %v288, %v297
    %300 = vset.pattern.permute.xlu0 1
    %301 = vperm.xlu0 %300, %v102
    %v302 = vpop.permute.xlu0 %301
    %v304 = vlaneseq
    %v305 = vshrl.u32 %v304, 7
    %v306 = vsub.s32 1, %v305
    %v307 = vrot.slane %v283, %v306
    %v308 = vlaneseq
    %v309 = vshrl.u32 %v308, 7
    %v310 = vsub.s32 1, %v309
    %v311 = vrot.slane %v284, %v310
    %v312 = vmul.f32 %v302, %v307
    %v313 = vmul.f32 %v302, %v311
    %v314 = vadd.f32 %v298, %v312
    %v315 = vadd.f32 %v299, %v313
    %316 = vset.pattern.permute.xlu0 2
    %317 = vperm.xlu0 %316, %v102
    %v318 = vpop.permute.xlu0 %317
    %v320 = vlaneseq
    %v321 = vshrl.u32 %v320, 7
    %v322 = vsub.s32 2, %v321
    %v323 = vrot.slane %v283, %v322
    %v324 = vlaneseq
    %v325 = vshrl.u32 %v324, 7
    %v326 = vsub.s32 2, %v325
    %v327 = vrot.slane %v284, %v326
    %v328 = vmul.f32 %v318, %v323
    %v329 = vmul.f32 %v318, %v327
    %v330 = vadd.f32 %v314, %v328
    %v331 = vadd.f32 %v315, %v329
    %332 = vset.pattern.permute.xlu0 3
    %333 = vperm.xlu0 %332, %v102
    %v334 = vpop.permute.xlu0 %333
    %v336 = vlaneseq
    %v337 = vshrl.u32 %v336, 7
    %v338 = vsub.s32 3, %v337
    %v339 = vrot.slane %v283, %v338
    %v340 = vlaneseq
    %v341 = vshrl.u32 %v340, 7
    %v342 = vsub.s32 3, %v341
    %v343 = vrot.slane %v284, %v342
    %v344 = vmul.f32 %v334, %v339
    %v345 = vmul.f32 %v334, %v343
    %v346 = vadd.f32 %v330, %v344
    %v347 = vadd.f32 %v331, %v345
    %348 = vset.pattern.permute.xlu0 4
    %349 = vperm.xlu0 %348, %v102
    %v350 = vpop.permute.xlu0 %349
    %v352 = vlaneseq
    %v353 = vshrl.u32 %v352, 7
    %v354 = vsub.s32 4, %v353
    %v355 = vrot.slane %v283, %v354
    %v356 = vlaneseq
    %v357 = vshrl.u32 %v356, 7
    %v358 = vsub.s32 4, %v357
    %v359 = vrot.slane %v284, %v358
    %v360 = vmul.f32 %v350, %v355
    %v361 = vmul.f32 %v350, %v359
    %v362 = vadd.f32 %v346, %v360
    %v363 = vadd.f32 %v347, %v361
    %364 = vset.pattern.permute.xlu0 5
    %365 = vperm.xlu0 %364, %v102
    %v366 = vpop.permute.xlu0 %365
    %v368 = vlaneseq
    %v369 = vshrl.u32 %v368, 7
    %v370 = vsub.s32 5, %v369
    %v371 = vrot.slane %v283, %v370
    %v372 = vlaneseq
    %v373 = vshrl.u32 %v372, 7
    %v374 = vsub.s32 5, %v373
    %v375 = vrot.slane %v284, %v374
    %v376 = vmul.f32 %v366, %v371
    %v377 = vmul.f32 %v366, %v375
    %v378 = vadd.f32 %v362, %v376
    %v379 = vadd.f32 %v363, %v377
    %380 = vset.pattern.permute.xlu0 6
    %381 = vperm.xlu0 %380, %v102
    %v382 = vpop.permute.xlu0 %381
    %v384 = vlaneseq
    %v385 = vshrl.u32 %v384, 7
    %v386 = vsub.s32 6, %v385
    %v387 = vrot.slane %v283, %v386
    %v388 = vlaneseq
    %v389 = vshrl.u32 %v388, 7
    %v390 = vsub.s32 6, %v389
    %v391 = vrot.slane %v284, %v390
    %v392 = vmul.f32 %v382, %v387
    %v393 = vmul.f32 %v382, %v391
    %v394 = vadd.f32 %v378, %v392
    %v395 = vadd.f32 %v379, %v393
    %396 = vset.pattern.permute.xlu0 7
    %397 = vperm.xlu0 %396, %v102
    %v398 = vpop.permute.xlu0 %397
    %v400 = vlaneseq
    %v401 = vshrl.u32 %v400, 7
    %v402 = vsub.s32 7, %v401
    %v403 = vrot.slane %v283, %v402
    %v404 = vlaneseq
    %v405 = vshrl.u32 %v404, 7
    %v406 = vsub.s32 7, %v405
    %v407 = vrot.slane %v284, %v406
    %v408 = vmul.f32 %v398, %v403
    %v409 = vmul.f32 %v398, %v407
    %v410 = vadd.f32 %v394, %v408
    %v411 = vadd.f32 %v395, %v409
    %413 = vset.pattern.permute.xlu0 0
    %414 = vperm.xlu0 %413, %v103
    %v415 = vpop.permute.xlu0 %414
    %v417 = vadd.f32 %v410, %v415
    %v418 = vadd.f32 %v411, %v415
    %419 = vst [vmem:[#allocation10] sm:$0xff] %v417
    %420 = vst [vmem:[#allocation10 + $0x8] sm:$0xff] %v418
    // Predicated region
    $region38: #{tpu_custom_call.1} parent=1 // pred_check
      _
    $region39: #{tpu_custom_call.1} parent=1 // pred_check_branch
      %422 = sbr.rel (0) target = $region41
    $region40: #{tpu_custom_call.1} parent=1 // pred_region
      %s424 = ssub.s32 256, 256
      %425 = vsyncadd [#allocation6], %s424
      %s427 = sshll.u32 [#allocation10], 4
      %s428 = int_to_ptr.vmem [resolvable:$true] %s427
      %430 = dma.vmem_to_hbm [thread:$0]  %s428, 256, %s7, [#allocation6]
    $region41: #{tpu_custom_call.1} parent=1 // pred_fallthru
      _
    // Predicated region
    $region42: #{tpu_custom_call.1} parent=1 // pred_check
      _
    $region43: #{tpu_custom_call.1} parent=1 // pred_check_branch
      %432 = sbr.rel (0) target = $region45
    $region44: #{tpu_custom_call.1} parent=1 // pred_region
      %433 = dma.done [#allocation6], 256
    $region45: #{tpu_custom_call.1} parent=1 // pred_fallthru
      _
    %434 = vsyncpa [#allocation5], 1
    %435 = vsyncpa [#allocation8], 1
    %436 = vsyncpa [#allocation6], 1

</llo_original>
